<compile_context>
chip_gen: v7x
topology: tpu7x:2x2x1
jax: 0.10.0
libtpu: 0.0.40
codegen_flags: <defaults>
</compile_context>

<pallas_src>
import functools
import math

import jax
import jax.numpy as jnp
from jax import lax
from jax.experimental import pallas as pl
from jax.experimental.pallas import tpu as pltpu


def _maxpool_s1_kernel(x_ref, o_ref, *, H):
    """One grid step: a (tile*H, W) slab of whole channel planes (plane height H)."""
    x = x_ref[...]                                    # (TH, W), TH = tile * H
    TH, W = x.shape

    # --- horizontal pass: m[r, w] = max(x[r, w], x[r, min(w+1, W-1)]) -------
    right = pltpu.roll(x, W - 1, 1)                   # right[r, w] = x[r, (w+1) % W]
    col = lax.broadcasted_iota(jnp.int32, (1, W), 1)
    m = jnp.maximum(x, jnp.where(col == W - 1, x, right))

    # --- vertical pass: out[r, w] = max(m[r, w], m[min(h+1, H-1) row, w]) ---
    # Block row offsets are multiples of H, so the bottom row of each plane is
    # exactly (row % H == H-1); masking it implements the replicate padding
    # and neutralizes the block-level wrap-around of the roll (including any
    # garbage rows of a partial trailing block).
    down = pltpu.roll(m, TH - 1, 0)                   # down[r, w] = m[(r+1) % TH, w]
    row = lax.broadcasted_iota(jnp.int32, (TH, 1), 0)
    o_ref[...] = jnp.maximum(m, jnp.where(row % H == H - 1, m, down))


def _pick_plane_tile(n_planes, H, W, itemsize):
    """Channel planes per grid step.

    Constraints:
      * second-minor block dim (tile*H) must be a multiple of the dtype's
        native sublane count, unless the block spans the whole axis;
      * in + out blocks, double-buffered, must fit comfortably in scoped VMEM.
    The grid uses cdiv, so `tile` need not divide n_planes (boundary blocks
    are masked by Pallas and are safe for this kernel).
    """
    sublanes = max(8, 32 // itemsize)                 # f32: 8, bf16: 16, int8/fp8: 32
    align = sublanes // math.gcd(H, sublanes)         # smallest tile with (tile*H) % sublanes == 0
    budget = 8 * 1024 * 1024                          # in + out, double-buffered
    cap = max(1, budget // (4 * H * W * itemsize))    # planes per block by VMEM
    tile = min(n_planes, (cap // align) * align)
    if tile >= align:
        return tile                                   # aligned, or == n_planes (full extent)
    return n_planes                                   # full-extent block: always legal


def max_pool_stride1(x):
    """2x2 / stride-1 max pool with replicate padding on right/bottom (same shape out)."""
    B, C, H, W = x.shape
    N = B * C
    itemsize = jnp.dtype(x.dtype).itemsize
    tile = _pick_plane_tile(N, H, W, itemsize)

    xf = x.reshape(N * H, W)                          # layout-preserving 2-D slab view
    kernel = functools.partial(_maxpool_s1_kernel, H=H)

    out = pl.pallas_call(
        kernel,
        out_shape=jax.ShapeDtypeStruct((N * H, W), x.dtype),
        grid=(pl.cdiv(N, tile),),
        in_specs=[pl.BlockSpec((tile * H, W), lambda i: (i, 0))],
        out_specs=pl.BlockSpec((tile * H, W), lambda i: (i, 0)),
        compiler_params=pltpu.CompilerParams(dimension_semantics=("parallel",)),
        cost_estimate=pl.CostEstimate(
            flops=3 * x.size,                         # 3 maxes per output element
            transcendentals=0,
            bytes_accessed=2 * x.size * itemsize,     # pure data movement
        ),
    )(xf)
    return out.reshape(B, C, H, W)


def max_pool_stride1_ref(x):
    # Pure-JAX reference matching F.max_pool2d(F.pad(x,(0,1,0,1),'replicate'),2,1).
    xp = jnp.pad(x, ((0, 0), (0, 0), (0, 1), (0, 1)), mode="edge")
    return jnp.maximum(
        jnp.maximum(xp[:, :, :-1, :-1], xp[:, :, :-1, 1:]),
        jnp.maximum(xp[:, :, 1:, :-1], xp[:, :, 1:, 1:]),
    )


if __name__ == "__main__":
    key = jax.random.PRNGKey(0)
    x = jax.random.normal(key, (2, 4, 16, 16), dtype=jnp.float32)

    out = jax.block_until_ready(max_pool_stride1(x))
    ref = max_pool_stride1_ref(x)

    assert out.shape == x.shape, out.shape
    assert out.dtype == x.dtype
    assert jnp.array_equal(out, ref), "Pallas MaxPoolStride1 mismatch vs reference"
    print("KERNEL_OK")
</pallas_src>

<mosaic_0001>
module attributes {stable_mosaic.version = 11 : i64} {
  func.func @_maxpool_s1_kernel(%arg0: i32, %arg1: memref<128x16xf32, #tpu.memory_space<vmem>>, %arg2: memref<128x16xf32, #tpu.memory_space<vmem>>) attributes {dimension_semantics = [#tpu.dimension_semantics<parallel>], iteration_bounds = array<i64: 1>, scalar_prefetch = 0 : i64, scratch_operands = 0 : i64, tpu.core_type = #tpu.core_type<tc>, window_params = [{transform_indices = @transform_0, window_bounds = array<i64: 128, 16>}, {transform_indices = @transform_1, window_bounds = array<i64: 128, 16>}]} {
    %c0 = arith.constant 0 : index
    %c0_0 = arith.constant 0 : index
    %0 = vector.load %arg1[%c0, %c0_0] : memref<128x16xf32, #tpu.memory_space<vmem>>, vector<128x16xf32>
    %c15_i32 = arith.constant 15 : i32
    %1 = tpu.dynamic_rotate %0 by %c15_i32 dim 1 : vector<128x16xf32>, i32 -> vector<128x16xf32>
    %2 = tpu.iota {dimensions = array<i32: 1>} : vector<1x16xi32>
    %c15_i32_1 = arith.constant 15 : i32
    %3 = vector.broadcast %c15_i32_1 : i32 to vector<1x16xi32>
    %4 = arith.cmpi eq, %2, %3 : vector<1x16xi32>
    %5 = vector.shape_cast %4 : vector<1x16xi1> to vector<1x16xi1>
    %6 = vector.broadcast %5 : vector<1x16xi1> to vector<128x16xi1>
    %7 = arith.select %6, %0, %1 : vector<128x16xi1>, vector<128x16xf32>
    %8 = arith.maximumf %0, %7 : vector<128x16xf32>
    %c127_i32 = arith.constant 127 : i32
    %9 = tpu.dynamic_rotate %8 by %c127_i32 dim 0 : vector<128x16xf32>, i32 -> vector<128x16xf32>
    %10 = tpu.iota {dimensions = array<i32: 0>} : vector<128x1xi32>
    %c16_i32 = arith.constant 16 : i32
    %c0_i32 = arith.constant 0 : i32
    %11 = arith.cmpi eq, %c16_i32, %c0_i32 : i32
    %c1_i32 = arith.constant 1 : i32
    %12 = arith.select %11, %c1_i32, %c16_i32 : i32
    %13 = vector.broadcast %12 : i32 to vector<128x1xi32>
    %14 = arith.remsi %10, %13 : vector<128x1xi32>
    %c0_i32_2 = arith.constant 0 : i32
    %15 = vector.broadcast %c0_i32_2 : i32 to vector<128x1xi32>
    %16 = arith.cmpi ne, %14, %15 : vector<128x1xi32>
    %c0_i32_3 = arith.constant 0 : i32
    %17 = vector.broadcast %c0_i32_3 : i32 to vector<128x1xi32>
    %18 = arith.cmpi slt, %14, %17 : vector<128x1xi32>
    %c0_i32_4 = arith.constant 0 : i32
    %19 = arith.cmpi slt, %12, %c0_i32_4 : i32
    %20 = vector.broadcast %19 : i1 to vector<128x1xi1>
    %21 = vector.broadcast %20 : vector<128x1xi1> to vector<128x1xi1>
    %22 = arith.xori %18, %21 : vector<128x1xi1>
    %23 = arith.andi %22, %16 : vector<128x1xi1>
    %24 = vector.broadcast %12 : i32 to vector<128x1xi32>
    %25 = arith.addi %14, %24 : vector<128x1xi32>
    %26 = arith.select %23, %25, %14 : vector<128x1xi1>, vector<128x1xi32>
    %c15_i32_5 = arith.constant 15 : i32
    %27 = vector.broadcast %c15_i32_5 : i32 to vector<128x1xi32>
    %28 = arith.cmpi eq, %26, %27 : vector<128x1xi32>
    %29 = vector.shape_cast %28 : vector<128x1xi1> to vector<128x1xi1>
    %30 = vector.broadcast %29 : vector<128x1xi1> to vector<128x16xi1>
    %31 = arith.select %30, %8, %9 : vector<128x16xi1>, vector<128x16xf32>
    %32 = arith.maximumf %8, %31 : vector<128x16xf32>
    %c0_6 = arith.constant 0 : index
    %c0_7 = arith.constant 0 : index
    %33 = vector.load %arg2[%c0_6, %c0_7] : memref<128x16xf32, #tpu.memory_space<vmem>>, vector<128x16xf32>
    tpu.vector_store %arg2[%c0_6, %c0_7], %32 {strides = array<i32>} : memref<128x16xf32, #tpu.memory_space<vmem>>, vector<128x16xf32>,
    return
  }
  func.func @transform_0(%arg0: i32) -> (i32, i32) {
    %c0_i32 = arith.constant 0 : i32
    %c0_i32_0 = arith.constant 0 : i32
    return %arg0, %c0_i32 : i32, i32
  }
  func.func @transform_1(%arg0: i32) -> (i32, i32) {
    %c0_i32 = arith.constant 0 : i32
    %c0_i32_0 = arith.constant 0 : i32
    return %arg0, %c0_i32 : i32, i32
  }
}

</mosaic_0001>

<llo_original>
// kernel: tpu_custom_call.1
$region0: #{tpu_custom_call.1}
  #allocation0 [shape = 'u32[]', space=smem, size = 0x4, offset = 0x4, fixed_abs, tag = 'smem constant byte address 0x4 - core index']
  #allocation1 [shape = 'u32[144,128]{1,0:T(1,128)}', space=vmem, size = 0x12000, scoped, tag = 'internal scratch']
  %s0 = inlined_call_operand.vmem [shape: f32[128,16], index: 0, kind: input, shape index: {}]
  %s1 = inlined_call_operand.vmem [shape: f32[128,16], index: 1, kind: output, shape index: {}]
  %s2 = sld [smem:[#allocation0]]
  $region14: #{tpu_custom_call.1} parent=0
    _
  %s4 = ssub.s32 1, %s2
  %s5 = scalar_select 0, %s4, %s2
  // Predicated region
  $region2: #{tpu_custom_call.1} parent=0 // pred_check
    _
  $region3: #{tpu_custom_call.1} parent=0 // pred_check_branch
    %7 = sbr.rel (0) target = $region5
  $region4: #{tpu_custom_call.1} parent=0 // pred_region
    _
  $region5: #{tpu_custom_call.1} parent=0 // pred_fallthru
    _
  %v8 = vld [vmem:[%s0] sm:$0xff]
  %v9 = vld [vmem:[%s0 + $0x8] sm:$0xff]
  %v10 = vld [vmem:[%s0 + $0x10] sm:$0xff]
  %v11 = vld [vmem:[%s0 + $0x18] sm:$0xff]
  %v12 = vld [vmem:[%s0 + $0x20] sm:$0xff]
  %v13 = vld [vmem:[%s0 + $0x28] sm:$0xff]
  %v14 = vld [vmem:[%s0 + $0x30] sm:$0xff]
  %v15 = vld [vmem:[%s0 + $0x38] sm:$0xff]
  %v16 = vld [vmem:[%s0 + $0x40] sm:$0xff]
  %v17 = vld [vmem:[%s0 + $0x48] sm:$0xff]
  %v18 = vld [vmem:[%s0 + $0x50] sm:$0xff]
  %v19 = vld [vmem:[%s0 + $0x58] sm:$0xff]
  %v20 = vld [vmem:[%s0 + $0x60] sm:$0xff]
  %v21 = vld [vmem:[%s0 + $0x68] sm:$0xff]
  %v22 = vld [vmem:[%s0 + $0x70] sm:$0xff]
  %v23 = vld [vmem:[%s0 + $0x78] sm:$0xff]
  %vm24 = vcmask 1047680
  %25 = vrot.lane.b32.xlu0 %v8, 16
  %v26 = vpop.permute.xlu0 %25
  %v27 = vsel %vm24, %v26, %v8
  %28 = vrot.lane.b32.xlu0 %v9, 16
  %v29 = vpop.permute.xlu0 %28
  %v30 = vsel %vm24, %v29, %v9
  %31 = vrot.lane.b32.xlu0 %v10, 16
  %v32 = vpop.permute.xlu0 %31
  %v33 = vsel %vm24, %v32, %v10
  %34 = vrot.lane.b32.xlu0 %v11, 16
  %v35 = vpop.permute.xlu0 %34
  %v36 = vsel %vm24, %v35, %v11
  %37 = vrot.lane.b32.xlu0 %v12, 16
  %v38 = vpop.permute.xlu0 %37
  %v39 = vsel %vm24, %v38, %v12
  %40 = vrot.lane.b32.xlu0 %v13, 16
  %v41 = vpop.permute.xlu0 %40
  %v42 = vsel %vm24, %v41, %v13
  %43 = vrot.lane.b32.xlu0 %v14, 16
  %v44 = vpop.permute.xlu0 %43
  %v45 = vsel %vm24, %v44, %v14
  %46 = vrot.lane.b32.xlu0 %v15, 16
  %v47 = vpop.permute.xlu0 %46
  %v48 = vsel %vm24, %v47, %v15
  %49 = vrot.lane.b32.xlu0 %v16, 16
  %v50 = vpop.permute.xlu0 %49
  %v51 = vsel %vm24, %v50, %v16
  %52 = vrot.lane.b32.xlu0 %v17, 16
  %v53 = vpop.permute.xlu0 %52
  %v54 = vsel %vm24, %v53, %v17
  %55 = vrot.lane.b32.xlu0 %v18, 16
  %v56 = vpop.permute.xlu0 %55
  %v57 = vsel %vm24, %v56, %v18
  %58 = vrot.lane.b32.xlu0 %v19, 16
  %v59 = vpop.permute.xlu0 %58
  %v60 = vsel %vm24, %v59, %v19
  %61 = vrot.lane.b32.xlu0 %v20, 16
  %v62 = vpop.permute.xlu0 %61
  %v63 = vsel %vm24, %v62, %v20
  %64 = vrot.lane.b32.xlu0 %v21, 16
  %v65 = vpop.permute.xlu0 %64
  %v66 = vsel %vm24, %v65, %v21
  %67 = vrot.lane.b32.xlu0 %v22, 16
  %v68 = vpop.permute.xlu0 %67
  %v69 = vsel %vm24, %v68, %v22
  %70 = vrot.lane.b32.xlu0 %v23, 16
  %v71 = vpop.permute.xlu0 %70
  %v72 = vsel %vm24, %v71, %v23
  %73 = vrot.lane.b32.xlu0 %v27, 16
  %v74 = vpop.permute.xlu0 %73
  %75 = vrot.lane.b32.xlu0 %v30, 16
  %v76 = vpop.permute.xlu0 %75
  %77 = vrot.lane.b32.xlu0 %v33, 16
  %v78 = vpop.permute.xlu0 %77
  %79 = vrot.lane.b32.xlu0 %v36, 16
  %v80 = vpop.permute.xlu0 %79
  %81 = vrot.lane.b32.xlu0 %v39, 16
  %v82 = vpop.permute.xlu0 %81
  %83 = vrot.lane.b32.xlu0 %v42, 16
  %v84 = vpop.permute.xlu0 %83
  %85 = vrot.lane.b32.xlu0 %v45, 16
  %v86 = vpop.permute.xlu0 %85
  %87 = vrot.lane.b32.xlu0 %v48, 16
  %v88 = vpop.permute.xlu0 %87
  %89 = vrot.lane.b32.xlu0 %v51, 16
  %v90 = vpop.permute.xlu0 %89
  %91 = vrot.lane.b32.xlu0 %v54, 16
  %v92 = vpop.permute.xlu0 %91
  %93 = vrot.lane.b32.xlu0 %v57, 16
  %v94 = vpop.permute.xlu0 %93
  %95 = vrot.lane.b32.xlu0 %v60, 16
  %v96 = vpop.permute.xlu0 %95
  %97 = vrot.lane.b32.xlu0 %v63, 16
  %v98 = vpop.permute.xlu0 %97
  %99 = vrot.lane.b32.xlu0 %v66, 16
  %v100 = vpop.permute.xlu0 %99
  %101 = vrot.lane.b32.xlu0 %v69, 16
  %v102 = vpop.permute.xlu0 %101
  %103 = vrot.lane.b32.xlu0 %v72, 16
  %v104 = vpop.permute.xlu0 %103
  %v105 = vsel %vm24, %v74, %v8
  %v106 = vsel %vm24, %v76, %v9
  %v107 = vsel %vm24, %v78, %v10
  %v108 = vsel %vm24, %v80, %v11
  %v109 = vsel %vm24, %v82, %v12
  %v110 = vsel %vm24, %v84, %v13
  %v111 = vsel %vm24, %v86, %v14
  %v112 = vsel %vm24, %v88, %v15
  %v113 = vsel %vm24, %v90, %v16
  %v114 = vsel %vm24, %v92, %v17
  %v115 = vsel %vm24, %v94, %v18
  %v116 = vsel %vm24, %v96, %v19
  %v117 = vsel %vm24, %v98, %v20
  %v118 = vsel %vm24, %v100, %v21
  %v119 = vsel %vm24, %v102, %v22
  %v120 = vsel %vm24, %v104, %v23
  %v121 = vlaneseq
  %v122 = vand.u32 %v121, 127
  %vm123 = vcmp.eq.s32.totalorder %v122, 15
  %v124 = vsel %vm123, 1, 0
  %vm125 = vcmp.eq.s32.totalorder %v124, 1
  %142 = vrot.lane.b32.xlu0 %v105, 127
  %v143 = vpop.permute.xlu0 %142
  %144 = vrot.lane.b32.xlu0 %v106, 127
  %v145 = vpop.permute.xlu0 %144
  %146 = vrot.lane.b32.xlu0 %v107, 127
  %v147 = vpop.permute.xlu0 %146
  %148 = vrot.lane.b32.xlu0 %v108, 127
  %v149 = vpop.permute.xlu0 %148
  %150 = vrot.lane.b32.xlu0 %v109, 127
  %v151 = vpop.permute.xlu0 %150
  %152 = vrot.lane.b32.xlu0 %v110, 127
  %v153 = vpop.permute.xlu0 %152
  %154 = vrot.lane.b32.xlu0 %v111, 127
  %v155 = vpop.permute.xlu0 %154
  %156 = vrot.lane.b32.xlu0 %v112, 127
  %v157 = vpop.permute.xlu0 %156
  %158 = vrot.lane.b32.xlu0 %v113, 127
  %v159 = vpop.permute.xlu0 %158
  %160 = vrot.lane.b32.xlu0 %v114, 127
  %v161 = vpop.permute.xlu0 %160
  %162 = vrot.lane.b32.xlu0 %v115, 127
  %v163 = vpop.permute.xlu0 %162
  %164 = vrot.lane.b32.xlu0 %v116, 127
  %v165 = vpop.permute.xlu0 %164
  %166 = vrot.lane.b32.xlu0 %v117, 127
  %v167 = vpop.permute.xlu0 %166
  %168 = vrot.lane.b32.xlu0 %v118, 127
  %v169 = vpop.permute.xlu0 %168
  %170 = vrot.lane.b32.xlu0 %v119, 127
  %v171 = vpop.permute.xlu0 %170
  %172 = vrot.lane.b32.xlu0 %v120, 127
  %v173 = vpop.permute.xlu0 %172
  %v190 = vsel %vm125, %v8, %v143
  %v191 = vsel %vm125, %v9, %v145
  %v192 = vsel %vm125, %v10, %v147
  %v193 = vsel %vm125, %v11, %v149
  %v194 = vsel %vm125, %v12, %v151
  %v195 = vsel %vm125, %v13, %v153
  %v196 = vsel %vm125, %v14, %v155
  %v197 = vsel %vm125, %v15, %v157
  %v198 = vsel %vm125, %v16, %v159
  %v199 = vsel %vm125, %v17, %v161
  %v200 = vsel %vm125, %v18, %v163
  %v201 = vsel %vm125, %v19, %v165
  %v202 = vsel %vm125, %v20, %v167
  %v203 = vsel %vm125, %v21, %v169
  %v204 = vsel %vm125, %v22, %v171
  %v205 = vsel %vm125, %v23, %v173
  %v206 = vmax.f32 %v8, %v190
  %v207 = vmax.f32 %v9, %v191
  %v208 = vmax.f32 %v10, %v192
  %v209 = vmax.f32 %v11, %v193
  %v210 = vmax.f32 %v12, %v194
  %v211 = vmax.f32 %v13, %v195
  %v212 = vmax.f32 %v14, %v196
  %v213 = vmax.f32 %v15, %v197
  %v214 = vmax.f32 %v16, %v198
  %v215 = vmax.f32 %v17, %v199
  %v216 = vmax.f32 %v18, %v200
  %v217 = vmax.f32 %v19, %v201
  %v218 = vmax.f32 %v20, %v202
  %v219 = vmax.f32 %v21, %v203
  %v220 = vmax.f32 %v22, %v204
  %v221 = vmax.f32 %v23, %v205
  %v222 = vrot.slane %v206, 1
  %v223 = vrot.slane %v207, 1
  %v224 = vrot.slane %v208, 1
  %v225 = vrot.slane %v209, 1
  %v226 = vrot.slane %v210, 1
  %v227 = vrot.slane %v211, 1
  %v228 = vrot.slane %v212, 1
  %v229 = vrot.slane %v213, 1
  %v230 = vrot.slane %v214, 1
  %v231 = vrot.slane %v215, 1
  %v232 = vrot.slane %v216, 1
  %v233 = vrot.slane %v217, 1
  %v234 = vrot.slane %v218, 1
  %v235 = vrot.slane %v219, 1
  %v236 = vrot.slane %v220, 1
  %v237 = vrot.slane %v221, 1
  %v238 = vlaneseq
  %v239 = vshrl.u32 %v238, 7
  %vm240 = vcmp.lt.s32.totalorder %v239, 7
  %v241 = vsel %vm240, %v236, %v237
  %v242 = vsel %vm240, %v235, %v236
  %v243 = vsel %vm240, %v234, %v235
  %v244 = vsel %vm240, %v233, %v234
  %v245 = vsel %vm240, %v232, %v233
  %v246 = vsel %vm240, %v231, %v232
  %v247 = vsel %vm240, %v230, %v231
  %v248 = vsel %vm240, %v229, %v230
  %v249 = vsel %vm240, %v228, %v229
  %v250 = vsel %vm240, %v227, %v228
  %v251 = vsel %vm240, %v226, %v227
  %v252 = vsel %vm240, %v225, %v226
  %v253 = vsel %vm240, %v224, %v225
  %v254 = vsel %vm240, %v223, %v224
  %v255 = vsel %vm240, %v222, %v223
  %v256 = vsel %vm240, %v237, %v222
  %v257 = vadd.s32 %v239, 8
  %v258 = vadd.s32 %v239, 16
  %v259 = vadd.s32 %v239, 24
  %v260 = vadd.s32 %v239, 32
  %v261 = vadd.s32 %v239, 40
  %v262 = vadd.s32 %v239, 48
  %v263 = vadd.s32 %v239, 56
  %v264 = vadd.s32 %v239, 64
  %v265 = vadd.s32 %v239, 72
  %v266 = vadd.s32 %v239, 80
  %v267 = vadd.s32 %v239, 88
  %v268 = vadd.s32 %v239, 96
  %v269 = vadd.s32 %v239, 104
  %v270 = vadd.s32 %v239, 112
  %v271 = vadd.s32 %v239, 120
  %vm272 = vcmp.lt.s32.totalorder %v239, 0
  %v273 = vsub.s32 0, %v239
  %v274 = vsel %vm272, %v273, %v239
  %v275 = vshrl.u32 %v274, 4
  %v276 = vand.u32 %v274, 15
  %v277 = vsub.s32 0, %v276
  %v278 = vsel %vm272, %v277, %v276
  %vm279 = vcmp.lt.s32.totalorder %v257, 0
  %v280 = vsub.s32 0, %v257
  %v281 = vsel %vm279, %v280, %v257
  %v282 = vshrl.u32 %v281, 4
  %v283 = vand.u32 %v281, 15
  %v284 = vsub.s32 0, %v283
  %v285 = vsel %vm279, %v284, %v283
  %vm286 = vcmp.lt.s32.totalorder %v258, 0
  %v287 = vsub.s32 0, %v258
  %v288 = vsel %vm286, %v287, %v258
  %v289 = vshrl.u32 %v288, 4
  %v290 = vand.u32 %v288, 15
  %v291 = vsub.s32 0, %v290
  %v292 = vsel %vm286, %v291, %v290
  %vm293 = vcmp.lt.s32.totalorder %v259, 0
  %v294 = vsub.s32 0, %v259
  %v295 = vsel %vm293, %v294, %v259
  %v296 = vshrl.u32 %v295, 4
  %v297 = vand.u32 %v295, 15
  %v298 = vsub.s32 0, %v297
  %v299 = vsel %vm293, %v298, %v297
  %vm300 = vcmp.lt.s32.totalorder %v260, 0
  %v301 = vsub.s32 0, %v260
  %v302 = vsel %vm300, %v301, %v260
  %v303 = vshrl.u32 %v302, 4
  %v304 = vand.u32 %v302, 15
  %v305 = vsub.s32 0, %v304
  %v306 = vsel %vm300, %v305, %v304
  %vm307 = vcmp.lt.s32.totalorder %v261, 0
  %v308 = vsub.s32 0, %v261
  %v309 = vsel %vm307, %v308, %v261
  %v310 = vshrl.u32 %v309, 4
  %v311 = vand.u32 %v309, 15
  %v312 = vsub.s32 0, %v311
  %v313 = vsel %vm307, %v312, %v311
  %vm314 = vcmp.lt.s32.totalorder %v262, 0
  %v315 = vsub.s32 0, %v262
  %v316 = vsel %vm314, %v315, %v262
  %v317 = vshrl.u32 %v316, 4
  %v318 = vand.u32 %v316, 15
  %v319 = vsub.s32 0, %v318
  %v320 = vsel %vm314, %v319, %v318
  %vm321 = vcmp.lt.s32.totalorder %v263, 0
  %v322 = vsub.s32 0, %v263
  %v323 = vsel %vm321, %v322, %v263
  %v324 = vshrl.u32 %v323, 4
  %v325 = vand.u32 %v323, 15
  %v326 = vsub.s32 0, %v325
  %v327 = vsel %vm321, %v326, %v325
  %vm328 = vcmp.lt.s32.totalorder %v264, 0
  %v329 = vsub.s32 0, %v264
  %v330 = vsel %vm328, %v329, %v264
  %v331 = vshrl.u32 %v330, 4
  %v332 = vand.u32 %v330, 15
  %v333 = vsub.s32 0, %v332
  %v334 = vsel %vm328, %v333, %v332
  %vm335 = vcmp.lt.s32.totalorder %v265, 0
  %v336 = vsub.s32 0, %v265
  %v337 = vsel %vm335, %v336, %v265
  %v338 = vshrl.u32 %v337, 4
  %v339 = vand.u32 %v337, 15
  %v340 = vsub.s32 0, %v339
  %v341 = vsel %vm335, %v340, %v339
  %vm342 = vcmp.lt.s32.totalorder %v266, 0
  %v343 = vsub.s32 0, %v266
  %v344 = vsel %vm342, %v343, %v266
  %v345 = vshrl.u32 %v344, 4
  %v346 = vand.u32 %v344, 15
  %v347 = vsub.s32 0, %v346
  %v348 = vsel %vm342, %v347, %v346
  %vm349 = vcmp.lt.s32.totalorder %v267, 0
  %v350 = vsub.s32 0, %v267
  %v351 = vsel %vm349, %v350, %v267
  %v352 = vshrl.u32 %v351, 4
  %v353 = vand.u32 %v351, 15
  %v354 = vsub.s32 0, %v353
  %v355 = vsel %vm349, %v354, %v353
  %vm356 = vcmp.lt.s32.totalorder %v268, 0
  %v357 = vsub.s32 0, %v268
  %v358 = vsel %vm356, %v357, %v268
  %v359 = vshrl.u32 %v358, 4
  %v360 = vand.u32 %v358, 15
  %v361 = vsub.s32 0, %v360
  %v362 = vsel %vm356, %v361, %v360
  %vm363 = vcmp.lt.s32.totalorder %v269, 0
  %v364 = vsub.s32 0, %v269
  %v365 = vsel %vm363, %v364, %v269
  %v366 = vshrl.u32 %v365, 4
  %v367 = vand.u32 %v365, 15
  %v368 = vsub.s32 0, %v367
  %v369 = vsel %vm363, %v368, %v367
  %vm370 = vcmp.lt.s32.totalorder %v270, 0
  %v371 = vsub.s32 0, %v270
  %v372 = vsel %vm370, %v371, %v270
  %v373 = vshrl.u32 %v372, 4
  %v374 = vand.u32 %v372, 15
  %v375 = vsub.s32 0, %v374
  %v376 = vsel %vm370, %v375, %v374
  %vm377 = vcmp.lt.s32.totalorder %v271, 0
  %v378 = vsub.s32 0, %v271
  %v379 = vsel %vm377, %v378, %v271
  %v380 = vshrl.u32 %v379, 4
  %v381 = vand.u32 %v379, 15
  %v382 = vsub.s32 0, %v381
  %v383 = vsel %vm377, %v382, %v381
  %vm384 = vcmp.ne.s32.totalorder %v278, 0
  %vm385 = vcmp.ne.s32.totalorder %v285, 0
  %vm386 = vcmp.ne.s32.totalorder %v292, 0
  %vm387 = vcmp.ne.s32.totalorder %v299, 0
  %vm388 = vcmp.ne.s32.totalorder %v306, 0
  %vm389 = vcmp.ne.s32.totalorder %v313, 0
  %vm390 = vcmp.ne.s32.totalorder %v320, 0
  %vm391 = vcmp.ne.s32.totalorder %v327, 0
  %vm392 = vcmp.ne.s32.totalorder %v334, 0
  %vm393 = vcmp.ne.s32.totalorder %v341, 0
  %vm394 = vcmp.ne.s32.totalorder %v348, 0
  %vm395 = vcmp.ne.s32.totalorder %v355, 0
  %vm396 = vcmp.ne.s32.totalorder %v362, 0
  %vm397 = vcmp.ne.s32.totalorder %v369, 0
  %vm398 = vcmp.ne.s32.totalorder %v376, 0
  %vm399 = vcmp.ne.s32.totalorder %v383, 0
  %vm400 = vcmp.lt.s32.totalorder %v278, 0
  %vm401 = vcmp.lt.s32.totalorder %v285, 0
  %vm402 = vcmp.lt.s32.totalorder %v292, 0
  %vm403 = vcmp.lt.s32.totalorder %v299, 0
  %vm404 = vcmp.lt.s32.totalorder %v306, 0
  %vm405 = vcmp.lt.s32.totalorder %v313, 0
  %vm406 = vcmp.lt.s32.totalorder %v320, 0
  %vm407 = vcmp.lt.s32.totalorder %v327, 0
  %vm408 = vcmp.lt.s32.totalorder %v334, 0
  %vm409 = vcmp.lt.s32.totalorder %v341, 0
  %vm410 = vcmp.lt.s32.totalorder %v348, 0
  %vm411 = vcmp.lt.s32.totalorder %v355, 0
  %vm412 = vcmp.lt.s32.totalorder %v362, 0
  %vm413 = vcmp.lt.s32.totalorder %v369, 0
  %vm414 = vcmp.lt.s32.totalorder %v376, 0
  %vm415 = vcmp.lt.s32.totalorder %v383, 0
  %vm416 = vmand %vm400, %vm384
  %vm417 = vmand %vm401, %vm385
  %vm418 = vmand %vm402, %vm386
  %vm419 = vmand %vm403, %vm387
  %vm420 = vmand %vm404, %vm388
  %vm421 = vmand %vm405, %vm389
  %vm422 = vmand %vm406, %vm390
  %vm423 = vmand %vm407, %vm391
  %vm424 = vmand %vm408, %vm392
  %vm425 = vmand %vm409, %vm393
  %vm426 = vmand %vm410, %vm394
  %vm427 = vmand %vm411, %vm395
  %vm428 = vmand %vm412, %vm396
  %vm429 = vmand %vm413, %vm397
  %vm430 = vmand %vm414, %vm398
  %vm431 = vmand %vm415, %vm399
  %v432 = vadd.s32 %v278, 16
  %v433 = vadd.s32 %v285, 16
  %v434 = vadd.s32 %v292, 16
  %v435 = vadd.s32 %v299, 16
  %v436 = vadd.s32 %v306, 16
  %v437 = vadd.s32 %v313, 16
  %v438 = vadd.s32 %v320, 16
  %v439 = vadd.s32 %v327, 16
  %v440 = vadd.s32 %v334, 16
  %v441 = vadd.s32 %v341, 16
  %v442 = vadd.s32 %v348, 16
  %v443 = vadd.s32 %v355, 16
  %v444 = vadd.s32 %v362, 16
  %v445 = vadd.s32 %v369, 16
  %v446 = vadd.s32 %v376, 16
  %v447 = vadd.s32 %v383, 16
  %v448 = vsel %vm416, %v432, %v278
  %v449 = vsel %vm417, %v433, %v285
  %v450 = vsel %vm418, %v434, %v292
  %v451 = vsel %vm419, %v435, %v299
  %v452 = vsel %vm420, %v436, %v306
  %v453 = vsel %vm421, %v437, %v313
  %v454 = vsel %vm422, %v438, %v320
  %v455 = vsel %vm423, %v439, %v327
  %v456 = vsel %vm424, %v440, %v334
  %v457 = vsel %vm425, %v441, %v341
  %v458 = vsel %vm426, %v442, %v348
  %v459 = vsel %vm427, %v443, %v355
  %v460 = vsel %vm428, %v444, %v362
  %v461 = vsel %vm429, %v445, %v369
  %v462 = vsel %vm430, %v446, %v376
  %v463 = vsel %vm431, %v447, %v383
  %vm464 = vcmp.eq.s32.totalorder %v448, 15
  %vm465 = vcmp.eq.s32.totalorder %v449, 15
  %vm466 = vcmp.eq.s32.totalorder %v450, 15
  %vm467 = vcmp.eq.s32.totalorder %v451, 15
  %vm468 = vcmp.eq.s32.totalorder %v452, 15
  %vm469 = vcmp.eq.s32.totalorder %v453, 15
  %vm470 = vcmp.eq.s32.totalorder %v454, 15
  %vm471 = vcmp.eq.s32.totalorder %v455, 15
  %vm472 = vcmp.eq.s32.totalorder %v456, 15
  %vm473 = vcmp.eq.s32.totalorder %v457, 15
  %vm474 = vcmp.eq.s32.totalorder %v458, 15
  %vm475 = vcmp.eq.s32.totalorder %v459, 15
  %vm476 = vcmp.eq.s32.totalorder %v460, 15
  %vm477 = vcmp.eq.s32.totalorder %v461, 15
  %vm478 = vcmp.eq.s32.totalorder %v462, 15
  %vm479 = vcmp.eq.s32.totalorder %v463, 15
  %v480 = vsel %vm464, 1, 0
  %v481 = vsel %vm465, 1, 0
  %v482 = vsel %vm466, 1, 0
  %v483 = vsel %vm467, 1, 0
  %v484 = vsel %vm468, 1, 0
  %v485 = vsel %vm469, 1, 0
  %v486 = vsel %vm470, 1, 0
  %v487 = vsel %vm471, 1, 0
  %v488 = vsel %vm472, 1, 0
  %v489 = vsel %vm473, 1, 0
  %v490 = vsel %vm474, 1, 0
  %v491 = vsel %vm475, 1, 0
  %v492 = vsel %vm476, 1, 0
  %v493 = vsel %vm477, 1, 0
  %v494 = vsel %vm478, 1, 0
  %v495 = vsel %vm479, 1, 0
  %vm496 = vcmp.eq.s32.totalorder %v480, 1
  %vm497 = vcmp.eq.s32.totalorder %v481, 1
  %vm498 = vcmp.eq.s32.totalorder %v482, 1
  %vm499 = vcmp.eq.s32.totalorder %v483, 1
  %vm500 = vcmp.eq.s32.totalorder %v484, 1
  %vm501 = vcmp.eq.s32.totalorder %v485, 1
  %vm502 = vcmp.eq.s32.totalorder %v486, 1
  %vm503 = vcmp.eq.s32.totalorder %v487, 1
  %vm504 = vcmp.eq.s32.totalorder %v488, 1
  %vm505 = vcmp.eq.s32.totalorder %v489, 1
  %vm506 = vcmp.eq.s32.totalorder %v490, 1
  %vm507 = vcmp.eq.s32.totalorder %v491, 1
  %vm508 = vcmp.eq.s32.totalorder %v492, 1
  %vm509 = vcmp.eq.s32.totalorder %v493, 1
  %vm510 = vcmp.eq.s32.totalorder %v494, 1
  %vm511 = vcmp.eq.s32.totalorder %v495, 1
  %v512 = vsel %vm496, %v206, %v255
  %v513 = vsel %vm497, %v207, %v254
  %v514 = vsel %vm498, %v208, %v253
  %v515 = vsel %vm499, %v209, %v252
  %v516 = vsel %vm500, %v210, %v251
  %v517 = vsel %vm501, %v211, %v250
  %v518 = vsel %vm502, %v212, %v249
  %v519 = vsel %vm503, %v213, %v248
  %v520 = vsel %vm504, %v214, %v247
  %v521 = vsel %vm505, %v215, %v246
  %v522 = vsel %vm506, %v216, %v245
  %v523 = vsel %vm507, %v217, %v244
  %v524 = vsel %vm508, %v218, %v243
  %v525 = vsel %vm509, %v219, %v242
  %v526 = vsel %vm510, %v220, %v241
  %v527 = vsel %vm511, %v221, %v256
  %v528 = vmax.f32 %v206, %v512
  %v529 = vmax.f32 %v207, %v513
  %v530 = vmax.f32 %v208, %v514
  %v531 = vmax.f32 %v209, %v515
  %v532 = vmax.f32 %v210, %v516
  %v533 = vmax.f32 %v211, %v517
  %v534 = vmax.f32 %v212, %v518
  %v535 = vmax.f32 %v213, %v519
  %v536 = vmax.f32 %v214, %v520
  %v537 = vmax.f32 %v215, %v521
  %v538 = vmax.f32 %v216, %v522
  %v539 = vmax.f32 %v217, %v523
  %v540 = vmax.f32 %v218, %v524
  %v541 = vmax.f32 %v219, %v525
  %v542 = vmax.f32 %v220, %v526
  %v543 = vmax.f32 %v221, %v527
  %vm544 = vcmask 130048
  %545 = vst.msk [vmem:[%s1] sm:$0xff] %vm544, %v528
  %546 = vst.msk [vmem:[%s1 + $0x8] sm:$0xff] %vm544, %v529
  %547 = vst.msk [vmem:[%s1 + $0x10] sm:$0xff] %vm544, %v530
  %548 = vst.msk [vmem:[%s1 + $0x18] sm:$0xff] %vm544, %v531
  %549 = vst.msk [vmem:[%s1 + $0x20] sm:$0xff] %vm544, %v532
  %550 = vst.msk [vmem:[%s1 + $0x28] sm:$0xff] %vm544, %v533
  %551 = vst.msk [vmem:[%s1 + $0x30] sm:$0xff] %vm544, %v534
  %552 = vst.msk [vmem:[%s1 + $0x38] sm:$0xff] %vm544, %v535
  %553 = vst.msk [vmem:[%s1 + $0x40] sm:$0xff] %vm544, %v536
  %554 = vst.msk [vmem:[%s1 + $0x48] sm:$0xff] %vm544, %v537
  %555 = vst.msk [vmem:[%s1 + $0x50] sm:$0xff] %vm544, %v538
  %556 = vst.msk [vmem:[%s1 + $0x58] sm:$0xff] %vm544, %v539
  %557 = vst.msk [vmem:[%s1 + $0x60] sm:$0xff] %vm544, %v540
  %558 = vst.msk [vmem:[%s1 + $0x68] sm:$0xff] %vm544, %v541
  %559 = vst.msk [vmem:[%s1 + $0x70] sm:$0xff] %vm544, %v542
  %560 = vst.msk [vmem:[%s1 + $0x78] sm:$0xff] %vm544, %v543
  // Predicated region
  $region6: #{tpu_custom_call.1} parent=0 // pred_check
    _
  $region7: #{tpu_custom_call.1} parent=0 // pred_check_branch
    %562 = sbr.rel (0) target = $region9
  $region8: #{tpu_custom_call.1} parent=0 // pred_region
    _
  $region9: #{tpu_custom_call.1} parent=0 // pred_fallthru
    _
  // Predicated region
  $region10: #{tpu_custom_call.1} parent=0 // pred_check
    _
  $region11: #{tpu_custom_call.1} parent=0 // pred_check_branch
    %564 = sbr.rel (0) target = $region13
  $region12: #{tpu_custom_call.1} parent=0 // pred_region
    _
  $region13: #{tpu_custom_call.1} parent=0 // pred_fallthru
    _

</llo_original>
